<compile_context>
chip_gen: v5e
topology: v5e:2x2
jax: 0.10.0
libtpu: 0.0.40
codegen_flags: <defaults>
</compile_context>

<pallas_src>
import functools

import jax
import jax.numpy as jnp
from jax.experimental import pallas as pl
from jax.experimental.pallas import tpu as pltpu

_LANES = 512           # lane-dense last dim (multiple of 128)
_MAX_BLOCK_ROWS = 512  # 512x512 f32 = 1 MiB per block


def _tile_max_kernel(x_ref, pmax_ref):
    """Per-tile partial max. x_ref: (BR, LANES) -> pmax_ref: (1, 8, LANES)."""
    x = x_ref[...]
    br, lanes = x.shape
    # Tile-aligned sublane regroup (BR, L) -> (BR//8, 8, L); max over the
    # leading axis is pure VPU (no cross-lane/XLU work, no masked select).
    pmax_ref[...] = jnp.max(x.reshape(br // 8, 8, lanes), axis=0)[None]


def _make_quant_kernel(dequantize):
    def kernel(params_ref, x_ref, out_ref):
        # params_ref (SMEM, f32[3]): [clip_val, scale, zero_point]
        clip_val = params_ref[0]
        scale = params_ref[1]
        zero_point = params_ref[2]  # == 0 because saturation_min == 0
        x = x_ref[...]
        c = jnp.clip(x, jnp.float32(0.0), clip_val)
        q = jnp.round(scale * c - zero_point)
        if dequantize:
            out_ref[...] = (q + zero_point) / scale
        else:
            out_ref[...] = q
    return kernel


def _pad_to_2d(x):
    """Flatten to a lane/sublane-dense (rows_padded, _LANES) slab."""
    total = x.size
    rows = pl.cdiv(total, _LANES)
    block_rows = min(_MAX_BLOCK_ROWS, ((rows + 7) // 8) * 8)
    rows_p = pl.cdiv(rows, block_rows) * block_rows
    pad = rows_p * _LANES - total
    xf = x.reshape(-1)
    if pad:
        xf = jnp.pad(xf, (0, pad))  # zero padding is neutral for the stats
    return xf.reshape(rows_p, _LANES), block_rows, rows_p // block_rows, total


@functools.partial(jax.jit, static_argnames=("num_bits", "dequantize", "training"))
def clipped_linear_quantization_t(x, statis_max, statisN, scl_train, scl_test,
                                  *, num_bits=8, dequantize=True, training=True):
    x2d, block_rows, grid, total = _pad_to_2d(x)

    if training:
        partials = pl.pallas_call(
            _tile_max_kernel,
            out_shape=jax.ShapeDtypeStruct((grid, 8, _LANES), jnp.float32),
            grid=(grid,),
            in_specs=[pl.BlockSpec((block_rows, _LANES), lambda i: (i, 0))],
            out_specs=pl.BlockSpec((1, 8, _LANES), lambda i: (i, 0, 0)),
            compiler_params=pltpu.CompilerParams(
                dimension_semantics=("parallel",)),
        )(x2d)
        global_max = jnp.max(partials)
        # PyTorch: max()<=0 -> 1e-4, else max of values > 1e-4. When the global
        # max exceeds 1e-4 the masked max equals the global max, so this
        # collapses to one scalar op (and guards the empty-selection case).
        input_max = jnp.maximum(global_max, jnp.float32(1e-4))
        statis_max = statis_max + input_max
        statisN = statisN + jnp.float32(1.0)
        clip_val = statis_max / statisN * scl_train
    else:
        clip_val = statis_max / statisN * scl_test

    # asymmetric_linear_quantization_params(num_bits, 0, clip_val, signed=False)
    # TODO(synk): PyTorch pulls clip_val to host via .item(); kept on-device here.
    n_levels = jnp.float32(2 ** num_bits - 1)
    scale = n_levels / clip_val
    zero_point = jnp.round(scale * jnp.float32(0.0))  # == 0 for saturation_min == 0
    params = jnp.concatenate([clip_val, scale, zero_point]).astype(jnp.float32)

    out2d = pl.pallas_call(
        _make_quant_kernel(dequantize),
        out_shape=jax.ShapeDtypeStruct(x2d.shape, x2d.dtype),
        grid=(grid,),
        in_specs=[
            pl.BlockSpec(memory_space=pltpu.SMEM),                   # params
            pl.BlockSpec((block_rows, _LANES), lambda i: (i, 0)),    # x tile
        ],
        out_specs=pl.BlockSpec((block_rows, _LANES), lambda i: (i, 0)),
        compiler_params=pltpu.CompilerParams(
            dimension_semantics=("parallel",)),
    )(params, x2d)

    out = out2d.reshape(-1)[:total].reshape(x.shape)
    return out, statis_max, statisN


if __name__ == "__main__":
    key = jax.random.PRNGKey(0)
    x = jax.random.normal(key, (2, 4, 16, 16), dtype=jnp.float32)

    # Module buffers/parameters from __init__ (deterministic).
    statis_max = jnp.zeros((1,), jnp.float32)
    statisN = jnp.zeros((1,), jnp.float32)
    scl_train = jnp.ones((1,), jnp.float32)
    scl_test = jnp.ones((1,), jnp.float32)
    num_bits = 8

    out, new_sm, new_sn = clipped_linear_quantization_t(
        x, statis_max, statisN, scl_train, scl_test,
        num_bits=num_bits, dequantize=True, training=True)
    jax.block_until_ready((out, new_sm, new_sn))

    # Plain-JAX reference mirroring the PyTorch forward.
    gmax = jnp.max(x)
    masked_max = jnp.max(jnp.where(x > 1e-4, x, -jnp.inf))
    input_max = jnp.where(gmax <= 0.0, jnp.float32(1e-4), masked_max)
    ref_sm = statis_max + input_max
    ref_sn = statisN + 1.0
    clip_val = ref_sm / ref_sn * scl_train
    n = jnp.float32(2 ** num_bits - 1)
    scale = n / clip_val
    zp = jnp.round(scale * 0.0)
    clamped = jnp.clip(x, 0.0, clip_val)
    ref_out = (jnp.round(scale * clamped - zp) + zp) / scale

    assert jnp.allclose(new_sm, ref_sm, rtol=1e-6, atol=1e-6)
    assert jnp.allclose(new_sn, ref_sn)
    assert jnp.allclose(out, ref_out, rtol=1e-5, atol=1e-5)

    print("KERNEL_OK")
</pallas_src>

<mosaic_0001>
module attributes {stable_mosaic.version = 11 : i64} {
  func.func @_tile_max_kernel(%arg0: i32, %arg1: memref<8x512xf32, #tpu.memory_space<vmem>>, %arg2: memref<1x8x512xf32, #tpu.memory_space<vmem>>) attributes {dimension_semantics = [#tpu.dimension_semantics<parallel>], iteration_bounds = array<i64: 1>, scalar_prefetch = 0 : i64, scratch_operands = 0 : i64, tpu.core_type = #tpu.core_type<tc>, window_params = [{transform_indices = @transform_0, window_bounds = array<i64: 8, 512>}, {transform_indices = @transform_1, window_bounds = array<i64: 1, 8, 512>}]} {
    %c0 = arith.constant 0 : index
    %c0_0 = arith.constant 0 : index
    %0 = vector.load %arg1[%c0, %c0_0] : memref<8x512xf32, #tpu.memory_space<vmem>>, vector<8x512xf32>
    %1 = vector.shape_cast %0 : vector<8x512xf32> to vector<1x8x512xf32>
    %cst = arith.constant dense<0xFF800000> : vector<8x512xf32>
    %2 = vector.multi_reduction <maximumf>, %1, %cst [0] : vector<1x8x512xf32> to vector<8x512xf32>
    %3 = vector.shape_cast %2 : vector<8x512xf32> to vector<1x8x512xf32>
    %c0_1 = arith.constant 0 : index
    %c0_2 = arith.constant 0 : index
    %c0_3 = arith.constant 0 : index
    %4 = vector.load %arg2[%c0_1, %c0_2, %c0_3] : memref<1x8x512xf32, #tpu.memory_space<vmem>>, vector<1x8x512xf32>
    tpu.vector_store %arg2[%c0_1, %c0_2, %c0_3], %3 {strides = array<i32>} : memref<1x8x512xf32, #tpu.memory_space<vmem>>, vector<1x8x512xf32>,
    return
  }
  func.func @transform_0(%arg0: i32) -> (i32, i32) {
    %c0_i32 = arith.constant 0 : i32
    %c0_i32_0 = arith.constant 0 : i32
    return %arg0, %c0_i32 : i32, i32
  }
  func.func @transform_1(%arg0: i32) -> (i32, i32, i32) {
    %c0_i32 = arith.constant 0 : i32
    %c0_i32_0 = arith.constant 0 : i32
    %c0_i32_1 = arith.constant 0 : i32
    return %arg0, %c0_i32, %c0_i32_0 : i32, i32, i32
  }
}

module attributes {stable_mosaic.version = 11 : i64} {
  func.func @kernel(%arg0: i32, %arg1: memref<3xf32, #tpu.memory_space<smem>>, %arg2: memref<8x512xf32, #tpu.memory_space<vmem>>, %arg3: memref<8x512xf32, #tpu.memory_space<vmem>>) attributes {dimension_semantics = [#tpu.dimension_semantics<parallel>], iteration_bounds = array<i64: 1>, scalar_prefetch = 0 : i64, scratch_operands = 0 : i64, tpu.core_type = #tpu.core_type<tc>, window_params = [{transform_indices = @transform_0, window_bounds = array<i64: 3>}, {transform_indices = @transform_1, window_bounds = array<i64: 8, 512>}, {transform_indices = @transform_2, window_bounds = array<i64: 8, 512>}]} {
    %c0 = arith.constant 0 : index
    %0 = memref.load %arg1[%c0] : memref<3xf32, #tpu.memory_space<smem>>
    %c1 = arith.constant 1 : index
    %1 = memref.load %arg1[%c1] : memref<3xf32, #tpu.memory_space<smem>>
    %c2 = arith.constant 2 : index
    %2 = memref.load %arg1[%c2] : memref<3xf32, #tpu.memory_space<smem>>
    %c0_0 = arith.constant 0 : index
    %c0_1 = arith.constant 0 : index
    %3 = vector.load %arg2[%c0_0, %c0_1] : memref<8x512xf32, #tpu.memory_space<vmem>>, vector<8x512xf32>
    %cst = arith.constant 0.000000e+00 : f32
    %4 = vector.broadcast %cst : f32 to vector<8x512xf32>
    %5 = arith.maximumf %4, %3 : vector<8x512xf32>
    %6 = vector.broadcast %0 : f32 to vector<8x512xf32>
    %7 = arith.minimumf %6, %5 : vector<8x512xf32>
    %8 = vector.broadcast %1 : f32 to vector<8x512xf32>
    %9 = arith.mulf %8, %7 : vector<8x512xf32>
    %10 = vector.broadcast %2 : f32 to vector<8x512xf32>
    %11 = arith.subf %9, %10 : vector<8x512xf32>
    %12 = math.roundeven %11 : vector<8x512xf32>
    %13 = vector.broadcast %2 : f32 to vector<8x512xf32>
    %14 = arith.addf %12, %13 : vector<8x512xf32>
    %15 = vector.broadcast %1 : f32 to vector<8x512xf32>
    %16 = arith.divf %14, %15 : vector<8x512xf32>
    %c0_2 = arith.constant 0 : index
    %c0_3 = arith.constant 0 : index
    %17 = vector.load %arg3[%c0_2, %c0_3] : memref<8x512xf32, #tpu.memory_space<vmem>>, vector<8x512xf32>
    tpu.vector_store %arg3[%c0_2, %c0_3], %16 {strides = array<i32>} : memref<8x512xf32, #tpu.memory_space<vmem>>, vector<8x512xf32>,
    return
  }
  func.func @transform_0(%arg0: i32) -> i32 {
    %c0_i32 = arith.constant 0 : i32
    %c0_i32_0 = arith.constant 0 : i32
    return %c0_i32 : i32
  }
  func.func @transform_1(%arg0: i32) -> (i32, i32) {
    %c0_i32 = arith.constant 0 : i32
    %c0_i32_0 = arith.constant 0 : i32
    return %arg0, %c0_i32 : i32, i32
  }
  func.func @transform_2(%arg0: i32) -> (i32, i32) {
    %c0_i32 = arith.constant 0 : i32
    %c0_i32_0 = arith.constant 0 : i32
    return %arg0, %c0_i32 : i32, i32
  }
}

</mosaic_0001>

<llo_original>
// kernel: clipped_linear_quantization_t.2
$region0: #{clipped_linear_quantization_t.2}
  #allocation0 [shape = 'u32[]', space=smem, size = 0x4, offset = 0x4, fixed_abs, tag = 'smem constant byte address 0x4 - core index']
  #allocation1 [shape = 'u32[72,128]{1,0:T(1,128)}', space=vmem, size = 0x9000, scoped, tag = 'internal scratch']
  %s0 = inlined_call_operand.vmem [shape: f32[8,512], index: 0, kind: input, shape index: {}]
  %s1 = inlined_call_operand.vmem [shape: f32[1,8,512], index: 1, kind: output, shape index: {}]
  %s2 = sld [smem:[#allocation0]]
  $region14: #{clipped_linear_quantization_t.2} parent=0
    _
  %s4 = ssub.s32 1, %s2
  %s5 = scalar_select 0, %s4, %s2
  // Predicated region
  $region2: #{clipped_linear_quantization_t.2} parent=0 // pred_check
    _
  $region3: #{clipped_linear_quantization_t.2} parent=0 // pred_check_branch
    %7 = sbr.rel (0) target = $region5
  $region4: #{clipped_linear_quantization_t.2} parent=0 // pred_region
    _
  $region5: #{clipped_linear_quantization_t.2} parent=0 // pred_fallthru
    _
  %v8 = vld [vmem:[%s0] sm:$0xff]
  %v9 = vld [vmem:[%s0 + $0x8] sm:$0xff]
  %v10 = vld [vmem:[%s0 + $0x10] sm:$0xff]
  %v11 = vld [vmem:[%s0 + $0x18] sm:$0xff]
  %12 = vst [vmem:[%s1] sm:$0xff] %v8
  %13 = vst [vmem:[%s1 + $0x8] sm:$0xff] %v9
  %14 = vst [vmem:[%s1 + $0x10] sm:$0xff] %v10
  %15 = vst [vmem:[%s1 + $0x18] sm:$0xff] %v11
  // Predicated region
  $region6: #{clipped_linear_quantization_t.2} parent=0 // pred_check
    _
  $region7: #{clipped_linear_quantization_t.2} parent=0 // pred_check_branch
    %17 = sbr.rel (0) target = $region9
  $region8: #{clipped_linear_quantization_t.2} parent=0 // pred_region
    _
  $region9: #{clipped_linear_quantization_t.2} parent=0 // pred_fallthru
    _
  // Predicated region
  $region10: #{clipped_linear_quantization_t.2} parent=0 // pred_check
    _
  $region11: #{clipped_linear_quantization_t.2} parent=0 // pred_check_branch
    %19 = sbr.rel (0) target = $region13
  $region12: #{clipped_linear_quantization_t.2} parent=0 // pred_region
    _
  $region13: #{clipped_linear_quantization_t.2} parent=0 // pred_fallthru
    _

// kernel: clipped_linear_quantization_t.3
$region0: #{clipped_linear_quantization_t.3}
  #allocation0 [shape = 'u32[]', space=smem, size = 0x4, offset = 0x4, fixed_abs, tag = 'smem constant byte address 0x4 - core index']
  #allocation1 [shape = 'u32[72,128]{1,0:T(1,128)}', space=vmem, size = 0x9000, scoped, tag = 'internal scratch']
  %s0 = inlined_call_operand.vmem [shape: f32[3], index: 0, kind: input, shape index: {}]
  %s1 = inlined_call_operand.vmem [shape: f32[8,512], index: 1, kind: input, shape index: {}]
  %s2 = inlined_call_operand.vmem [shape: f32[8,512], index: 2, kind: output, shape index: {}]
  %s3 = sld [smem:[#allocation0]]
  $region22: #{clipped_linear_quantization_t.3} parent=0
    _
  %s5 = ssub.s32 1, %s3
  %s6 = scalar_select 0, %s5, %s3
  $region1: #{clipped_linear_quantization_t.3} parent=0
    #allocation2 [shape = 'u8[512]{0}', space=smem, size = 0x200, scoped, tag = 'input window, operand 0, single buffered']
    #allocation3 [shape = 's32[1]{0}', space=sflag, size = 0x4, scoped, tag = 'scoped memory for clipped_linear_quantization_t.3']
    %7 = vsyncpa [#allocation3], 0
    // Predicated region
    $region2: #{clipped_linear_quantization_t.3} parent=1 // pred_check
      _
    $region3: #{clipped_linear_quantization_t.3} parent=1 // pred_check_branch
      %9 = sbr.rel (0) target = $region5
    $region4: #{clipped_linear_quantization_t.3} parent=1 // pred_region
      %11 = vsyncadd [#allocation3], 0
      %s13 = sshll.u32 %s0, 4
      %s14 = int_to_ptr.vmem [resolvable:$true] %s13
      %16 = dma.vmem_to_smem %s14, 16, [#allocation2], [#allocation3]
    $region5: #{clipped_linear_quantization_t.3} parent=1 // pred_fallthru
      _
    // Predicated region
    $region6: #{clipped_linear_quantization_t.3} parent=1 // pred_check
      _
    $region7: #{clipped_linear_quantization_t.3} parent=1 // pred_check_branch
      %18 = sbr.rel (0) target = $region9
    $region8: #{clipped_linear_quantization_t.3} parent=1 // pred_region
      _
    $region9: #{clipped_linear_quantization_t.3} parent=1 // pred_fallthru
      _
    // Predicated region
    $region10: #{clipped_linear_quantization_t.3} parent=1 // pred_check
      _
    $region11: #{clipped_linear_quantization_t.3} parent=1 // pred_check_branch
      %20 = sbr.rel (0) target = $region13
    $region12: #{clipped_linear_quantization_t.3} parent=1 // pred_region
      %22 = dma.done [#allocation3], 16
    $region13: #{clipped_linear_quantization_t.3} parent=1 // pred_fallthru
      _
    %23 = sfence
    %s24 = sld [smem:[#allocation2]]
    %s25 = sld [smem:[#allocation2 + $0x1]]
    %s26 = sld [smem:[#allocation2 + $0x2]]
    %v27 = vld [vmem:[%s1] sm:$0xff]
    %v28 = vld [vmem:[%s1 + $0x8] sm:$0xff]
    %v29 = vld [vmem:[%s1 + $0x10] sm:$0xff]
    %v30 = vld [vmem:[%s1 + $0x18] sm:$0xff]
    %v31 = vmax.f32 %v27, 0.0
    %v32 = vmax.f32 %v28, 0.0
    %v33 = vmax.f32 %v29, 0.0
    %v34 = vmax.f32 %v30, 0.0
    %v35 = vstv %s24
    %v36 = vmin.f32 %v35, %v31
    %v37 = vmin.f32 %v35, %v32
    %v38 = vmin.f32 %v35, %v33
    %v39 = vmin.f32 %v35, %v34
    %v40 = vstv %s25
    %v41 = vmul.f32 %v40, %v36
    %v42 = vmul.f32 %v40, %v37
    %v43 = vmul.f32 %v40, %v38
    %v44 = vmul.f32 %v40, %v39
    %v45 = vstv %s26
    %v46 = vsub.f32 %v41, %v45
    %v47 = vsub.f32 %v42, %v45
    %v48 = vsub.f32 %v43, %v45
    %v49 = vsub.f32 %v44, %v45
    %v50 = vround.ne.pseudo %v46
    %v51 = vround.ne.pseudo %v47
    %v52 = vround.ne.pseudo %v48
    %v53 = vround.ne.pseudo %v49
    %v54 = vadd.f32 %v50, %v45
    %v55 = vadd.f32 %v51, %v45
    %v56 = vadd.f32 %v52, %v45
    %v57 = vadd.f32 %v53, %v45
    %v58 = vrcp.pop %v40
    %v59 = vmul.f32 %v40, %v58
    %v60 = vsub.f32 1.0, %v59
    %v61 = vmul.f32 %v58, %v60
    %v62 = vadd.f32 %v58, %v61
    %vm63 = vweird.f32 %v40
    %vm64 = vweird.f32 %v58
    %vm65 = vmor %vm63, %vm64
    %v66 = vsel %vm65, %v58, %v62
    %v67 = vand.u32 2147483647, %v40
    %vm68 = vcmp.eq.f32.partialorder %v67, 8.507059e+37
    %v69 = vand.u32 %v40, 2147483648
    %v70 = vor.u32 1.1754944e-38, %v69
    %v71 = vsel %vm68, %v70, %v66
    %v72 = vmul.f32 %v54, %v71
    %v73 = vmul.f32 %v55, %v71
    %v74 = vmul.f32 %v56, %v71
    %v75 = vmul.f32 %v57, %v71
    %76 = vst [vmem:[%s2] sm:$0xff] %v72
    %77 = vst [vmem:[%s2 + $0x8] sm:$0xff] %v73
    %78 = vst [vmem:[%s2 + $0x10] sm:$0xff] %v74
    %79 = vst [vmem:[%s2 + $0x18] sm:$0xff] %v75
    // Predicated region
    $region14: #{clipped_linear_quantization_t.3} parent=1 // pred_check
      _
    $region15: #{clipped_linear_quantization_t.3} parent=1 // pred_check_branch
      %81 = sbr.rel (0) target = $region17
    $region16: #{clipped_linear_quantization_t.3} parent=1 // pred_region
      _
    $region17: #{clipped_linear_quantization_t.3} parent=1 // pred_fallthru
      _
    // Predicated region
    $region18: #{clipped_linear_quantization_t.3} parent=1 // pred_check
      _
    $region19: #{clipped_linear_quantization_t.3} parent=1 // pred_check_branch
      %83 = sbr.rel (0) target = $region21
    $region20: #{clipped_linear_quantization_t.3} parent=1 // pred_region
      _
    $region21: #{clipped_linear_quantization_t.3} parent=1 // pred_fallthru
      _
    %84 = vsyncpa [#allocation3], 1

</llo_original>
